<compile_context>
chip_gen: v7x
topology: tpu7x:2x2x1
jax: 0.10.0
libtpu: 0.0.40
codegen_flags: <defaults>
</compile_context>

<pallas_src>
import functools

import jax
import jax.numpy as jnp
from jax.experimental import pallas as pl
from jax.experimental.pallas import tpu as pltpu


_MASK_NEG = -1.0e30   # additive mask for non-edges
_M_FLOOR = -1.0e25    # floor for the running max: exp(_MASK_NEG - _M_FLOOR) == 0 in f32


def _choose_tiles(n):
    """Pad node count to a multiple of 128; pick dst/src tile sizes."""
    tq = 128
    n_pad = ((n + tq - 1) // tq) * tq
    tk = 128
    if n_pad >= 1024:                       # larger src tiles for big graphs
        for cand in (512, 256):
            if n_pad % cand == 0:
                tk = cand
                break
    return n_pad, tq, tk


# ---------------------------------------------------------------------------
# Kernel 1: fused per-head projection + attention logits (+ optional residual
# projection), one MXU pass over the row tile.
#   feat[h]  = x @ W[h]           -> (H, N, D) bf16  (head-major: leading-axis reads later)
#   el_er    = x @ A              -> (N, 2H)   f32   (A folds attn_l / attn_r into W)
#   res      = x @ W_res          -> (N, H*D)  f32   (only when a residual projection exists)
# ---------------------------------------------------------------------------
def _gat_project_kernel(h_ref, w_ref, a_ref, *rest, num_heads, has_wres):
    if has_wres:
        wres_ref, feat_ref, el_er_ref, res_ref = rest
    else:
        feat_ref, el_er_ref = rest

    h = h_ref[...]                                                      # (tm, Fin) bf16
    for hd in range(num_heads):                                         # static small loop
        f = jnp.dot(h, w_ref[hd], preferred_element_type=jnp.float32)   # (tm, D) f32
        feat_ref[hd] = f.astype(feat_ref.dtype)
    el_er_ref[...] = jnp.dot(h, a_ref[...],
                             preferred_element_type=jnp.float32)        # (tm, 2H) f32
    if has_wres:
        res_ref[...] = jnp.dot(h, wres_ref[...],
                               preferred_element_type=jnp.float32).astype(res_ref.dtype)


def gat_project(h_bf, w_bf, a_bf, w_res_bf, *, tm, num_heads, head_dim):
    n_pad, fin = h_bf.shape
    H, D = num_heads, head_dim
    HD = H * D
    has_wres = w_res_bf is not None

    in_specs = [
        pl.BlockSpec((tm, fin), lambda i: (i, 0)),          # x rows (tiled)
        pl.BlockSpec((H, fin, D), lambda i: (0, 0, 0)),     # W (shared)
        pl.BlockSpec((fin, 2 * H), lambda i: (0, 0)),       # folded attn weights (shared)
    ]
    operands = [h_bf, w_bf, a_bf]
    out_shapes = [jax.ShapeDtypeStruct((H, n_pad, D), jnp.bfloat16),
                  jax.ShapeDtypeStruct((n_pad, 2 * H), jnp.float32)]
    out_specs = [pl.BlockSpec((H, tm, D), lambda i: (0, i, 0)),
                 pl.BlockSpec((tm, 2 * H), lambda i: (i, 0))]
    if has_wres:
        in_specs.append(pl.BlockSpec((fin, HD), lambda i: (0, 0)))
        operands.append(w_res_bf)
        out_shapes.append(jax.ShapeDtypeStruct((n_pad, HD), jnp.float32))
        out_specs.append(pl.BlockSpec((tm, HD), lambda i: (i, 0)))

    kernel = functools.partial(_gat_project_kernel,
                               num_heads=H, has_wres=has_wres)
    return pl.pallas_call(
        kernel,
        out_shape=tuple(out_shapes),
        grid_spec=pltpu.PrefetchScalarGridSpec(
            num_scalar_prefetch=0,
            grid=(n_pad // tm,),
            in_specs=in_specs,
            out_specs=out_specs),
        compiler_params=pltpu.CompilerParams(
            dimension_semantics=("parallel",)),
    )(*operands)


# ---------------------------------------------------------------------------
# Kernel 2: masked edge-softmax + aggregation.
# Grid = (dst tiles ["parallel"], src tiles ["arbitrary"]), online softmax
# state in VMEM scratch, empty adjacency tiles skipped via an SMEM tile map.
# ---------------------------------------------------------------------------
def _gat_attend_kernel(tmap_ref, el_t_ref, er_ref, feat_ref, adj_ref, *rest,
                       num_heads, head_dim, negative_slope, apply_elu, has_residual):
    if has_residual:
        res_ref, o_ref, acc_ref, m_ref, l_ref = rest
    else:
        o_ref, acc_ref, m_ref, l_ref = rest

    i = pl.program_id(0)
    k = pl.program_id(1)
    nk = pl.num_programs(1)

    @pl.when(k == 0)
    def _init():
        m_ref[...] = jnp.full_like(m_ref, _M_FLOOR)
        l_ref[...] = jnp.zeros_like(l_ref)
        acc_ref[...] = jnp.zeros_like(acc_ref)

    @pl.when(tmap_ref[i, k] != 0)          # skip fully masked (dst, src) tiles
    def _compute():
        # Additive mask built once per tile (hoisted out of the head loop).
        mask_add = jnp.where(adj_ref[...] != 0, 0.0, _MASK_NEG)        # (tq, tk) f32
        er_all = er_ref[...]                                           # (tq, H)  f32

        for h in range(num_heads):                                     # static head loop
            er_col = er_all[:, h:h + 1]                                # (tq, 1)
            el_row = el_t_ref[h:h + 1, :]                              # (1, tk)
            s = er_col + el_row                                        # (tq, tk)
            s = jnp.maximum(s, negative_slope * s)                     # LeakyReLU (slope<1)
            s = s + mask_add                                           # masked -> ~-1e30

            m_prev = m_ref[h]                                          # (tq, 1)
            # Floor keeps masked-only rows from dragging the max to -1e30,
            # so exp() underflows masked entries to exactly 0.
            m_new = jnp.maximum(m_prev, jnp.max(s, axis=-1, keepdims=True))
            a = jnp.exp(m_prev - m_new)                                # correction factor
            p = jnp.exp(s - m_new)                                     # masked entries -> 0
            l_ref[h] = a * l_ref[h] + jnp.sum(p, axis=-1, keepdims=True)
            acc_ref[h] = a * acc_ref[h] + jnp.dot(
                p.astype(jnp.bfloat16), feat_ref[h],
                preferred_element_type=jnp.float32)                    # (tq, D)
            m_ref[h] = m_new

    @pl.when(k == nk - 1)
    def _finalize():
        outs = []
        for h in range(num_heads):
            # Guard zero in-degree rows (all masked everywhere): alpha -> 0, not NaN.
            inv = pl.reciprocal(jnp.maximum(l_ref[h], jnp.float32(1e-30)), approx=True)
            outs.append(acc_ref[h] * inv)
        out = jnp.concatenate(outs, axis=-1)                           # (tq, H*D) lane-dense
        if has_residual:
            out = out + res_ref[...]
        if apply_elu:
            out = jnp.where(out > 0, out, jnp.exp(out) - 1.0)          # ELU
        o_ref[...] = out.astype(o_ref.dtype)                           # single full-width store


def gat_attend(el_t, er, feat, adj_i8, res, tmap, *, num_heads, head_dim,
               negative_slope, apply_elu, tq, tk):
    n_pad = er.shape[0]
    H, D = num_heads, head_dim
    HD = H * D
    has_residual = res is not None

    kernel = functools.partial(
        _gat_attend_kernel,
        num_heads=H, head_dim=D, negative_slope=negative_slope,
        apply_elu=apply_elu, has_residual=has_residual)

    in_specs = [
        pl.BlockSpec((H, tk), lambda i, k, t: (0, k)),        # el (head-major, src-tiled)
        pl.BlockSpec((tq, H), lambda i, k, t: (i, 0)),        # er (dst-tiled)
        pl.BlockSpec((H, tk, D), lambda i, k, t: (0, k, 0)),  # feat (head-major, src-tiled)
        pl.BlockSpec((tq, tk), lambda i, k, t: (i, k)),       # adjacency (int8)
    ]
    operands = [el_t, er, feat, adj_i8]
    if has_residual:
        in_specs.append(pl.BlockSpec((tq, HD), lambda i, k, t: (i, 0)))
        operands.append(res.astype(jnp.float32))

    return pl.pallas_call(
        kernel,
        out_shape=jax.ShapeDtypeStruct((n_pad, HD), jnp.float32),
        grid_spec=pltpu.PrefetchScalarGridSpec(
            num_scalar_prefetch=1,                             # tile-nonzero map -> SMEM
            grid=(n_pad // tq, n_pad // tk),
            in_specs=in_specs,
            out_specs=pl.BlockSpec((tq, HD), lambda i, k, t: (i, 0)),
            scratch_shapes=[pltpu.VMEM((H, tq, D), jnp.float32),   # acc
                            pltpu.VMEM((H, tq, 1), jnp.float32),   # running max
                            pltpu.VMEM((H, tq, 1), jnp.float32)]), # running denom
        compiler_params=pltpu.CompilerParams(
            dimension_semantics=("parallel", "arbitrary")),
    )(tmap, *operands)


# ---------------------------------------------------------------------------
# Layer wrapper + model glue (plain JAX).
# ---------------------------------------------------------------------------
def gat_conv_layer(h, p, adj_i8, tmap, *, negative_slope, apply_elu, tq, tk):
    """One GATConv layer on padded inputs. Returns the flattened (Np, H*D) layout."""
    H, D = p["H"], p["D"]
    W = p["W"]                                                  # (H, Fin, D)

    # Fold attention vectors into the projection so el/er come off the MXU.
    a_l = jnp.einsum("hfd,hd->fh", W, p["attn_l"][:, 0, :])     # (Fin, H)
    a_r = jnp.einsum("hfd,hd->fh", W, p["attn_r"][:, 0, :])     # (Fin, H)
    A = jnp.concatenate([a_l, a_r], axis=1)                     # (Fin, 2H)

    w_res_bf = None
    if p["residual"] and p["W_res"] is not None:
        w_res_bf = p["W_res"].astype(jnp.bfloat16)

    outs = gat_project(h.astype(jnp.bfloat16),
                       W.astype(jnp.bfloat16),
                       A.astype(jnp.bfloat16),
                       w_res_bf,
                       tm=tq, num_heads=H, head_dim=D)
    if w_res_bf is not None:
        feat, el_er, res = outs
    else:
        feat, el_er = outs
        res = h if p["residual"] else None                      # identity residual (Fin == H*D)

    el_t = jnp.transpose(el_er[:, :H])                          # (H, Np)  tiny
    er = el_er[:, H:]                                           # (Np, H)

    return gat_attend(el_t, er, feat, adj_i8, res, tmap,
                      num_heads=H, head_dim=D,
                      negative_slope=negative_slope, apply_elu=apply_elu,
                      tq=tq, tk=tk)


def _tile_nonzero_map(adj_i8, tq, tk):
    n_pad = adj_i8.shape[0]
    nd, ns = n_pad // tq, n_pad // tk
    blocks = adj_i8.reshape(nd, tq, ns, tk).astype(jnp.int32)
    return (blocks.sum(axis=(1, 3)) > 0).astype(jnp.int32)      # (nd, ns)


def init_gat_params(key, num_layers, in_dim, num_hidden, num_classes, heads, residual):
    params = []
    fin = in_dim
    for l in range(num_layers + 1):
        out_dim = num_hidden if l < num_layers else num_classes
        H = heads[l]
        use_res = bool(residual) and l > 0   # first layer has residual=False in the module
        key, k1, k2, k3, k4 = jax.random.split(key, 5)
        p = dict(
            W=jax.random.normal(k1, (H, fin, out_dim), jnp.float32) * 0.1,
            attn_l=jax.random.normal(k2, (H, 1, out_dim), jnp.float32) * 0.1,
            attn_r=jax.random.normal(k3, (H, 1, out_dim), jnp.float32) * 0.1,
            residual=use_res,
            W_res=None,
            H=H,
            D=out_dim,
        )
        if use_res and fin != H * out_dim:
            p["W_res"] = jax.random.normal(k4, (fin, H * out_dim), jnp.float32) * 0.1
        params.append(p)
        fin = H * out_dim
    return params


def gat_forward(params, x, adj_i8, negative_slope):
    """Matches GAT.forward: hidden layers flatten heads, last layer means them."""
    N = x.shape[0]
    n_pad, tq, tk = _choose_tiles(N)

    # Pad nodes to a tile multiple; pad nodes get empty adjacency rows/cols.
    xp = jnp.zeros((n_pad, x.shape[1]), x.dtype).at[:N].set(x)
    adjp = jnp.zeros((n_pad, n_pad), jnp.int8).at[:N, :N].set(adj_i8)
    tmap = _tile_nonzero_map(adjp, tq, tk)

    h = xp
    num_layers = len(params) - 1
    for l in range(num_layers):
        h = gat_conv_layer(h, params[l], adjp, tmap,
                           negative_slope=negative_slope, apply_elu=True,
                           tq=tq, tk=tk)                        # (Np, H*D)
    p = params[-1]
    out = gat_conv_layer(h, p, adjp, tmap,
                         negative_slope=negative_slope, apply_elu=False,
                         tq=tq, tk=tk)                          # (Np, H*D)
    out = out[:N]
    return out.reshape(N, p["H"], p["D"]).mean(axis=1)          # .mean(1)


# ---------------------------------------------------------------------------
# Pure-JAX f32 reference for correctness checking.
# ---------------------------------------------------------------------------
def _residual_feat_ref(h, p):
    N = h.shape[0]
    H, D = p["H"], p["D"]
    if not p["residual"]:
        return jnp.zeros((H, N, D), jnp.float32)
    r = h if p["W_res"] is None else h @ p["W_res"]
    return jnp.transpose(r.reshape(N, H, D), (1, 0, 2))


def _gat_conv_ref(h, W, attn_l, attn_r, adj, res, negative_slope, apply_elu):
    feat = jnp.einsum("nf,hfd->hnd", h, W)
    el = jnp.sum(feat * attn_l, axis=-1)
    er = jnp.sum(feat * attn_r, axis=-1)
    scores = er[:, :, None] + el[:, None, :]
    scores = jnp.where(scores > 0, scores, negative_slope * scores)
    mask = adj[None] != 0
    scores = jnp.where(mask, scores, -1e30)
    m = jnp.max(scores, axis=-1, keepdims=True)
    p = jnp.where(mask, jnp.exp(scores - m), 0.0)
    alpha = p / jnp.sum(p, axis=-1, keepdims=True)
    out = jnp.einsum("hvu,hud->hvd", alpha, feat) + res
    if apply_elu:
        out = jnp.where(out > 0, out, jnp.exp(out) - 1.0)
    return out


def gat_forward_ref(params, x, adj, negative_slope):
    h = x
    num_layers = len(params) - 1
    for l in range(num_layers):
        p = params[l]
        out = _gat_conv_ref(h, p["W"], p["attn_l"], p["attn_r"], adj,
                            _residual_feat_ref(h, p), negative_slope, True)
        H, N, D = out.shape
        h = jnp.transpose(out, (1, 0, 2)).reshape(N, H * D)
    p = params[-1]
    out = _gat_conv_ref(h, p["W"], p["attn_l"], p["attn_r"], adj,
                        _residual_feat_ref(h, p), negative_slope, False)
    return jnp.mean(jnp.transpose(out, (1, 0, 2)), axis=1)


# ---------------------------------------------------------------------------
if __name__ == "__main__":
    # Small, deterministic configuration.  N=200 is NOT a tile multiple, so the
    # padding path, the multi-src-tile online softmax, and the empty-tile skip
    # are all exercised (edges only among the first 100 nodes + self-loops).
    N = 200
    in_dim = 32
    num_hidden = 16
    num_classes = 8
    num_layers = 2
    heads = [2, 2, 2]
    negative_slope = 0.2
    residual = True

    key = jax.random.PRNGKey(0)
    key, kx, kadj, kparams = jax.random.split(key, 4)

    x = jax.random.normal(kx, (N, in_dim), jnp.float32)

    # Deterministic sparse graph: random edges among the first 100 nodes,
    # self-loops everywhere (so every node has at least one incoming edge).
    rand_edges = jax.random.uniform(kadj, (N, N)) < 0.1
    in_block = jnp.arange(N) < 100
    adj_f = jnp.where(in_block[:, None] & in_block[None, :], rand_edges, False)
    adj_f = adj_f.astype(jnp.float32)
    adj_f = jnp.maximum(adj_f, jnp.eye(N, dtype=jnp.float32))
    adj_i8 = adj_f.astype(jnp.int8)

    params = init_gat_params(kparams, num_layers, in_dim, num_hidden,
                             num_classes, heads, residual)

    logits = jax.block_until_ready(gat_forward(params, x, adj_i8, negative_slope))
    ref = jax.block_until_ready(gat_forward_ref(params, x, adj_i8, negative_slope))

    assert logits.shape == (N, num_classes), logits.shape
    max_err = float(jnp.max(jnp.abs(logits - ref)))
    # bf16 MXU inputs + approximate reciprocal vs f32 reference -> relaxed tolerance.
    assert jnp.allclose(logits, ref, rtol=4e-2, atol=4e-2), max_err

    print("KERNEL_OK")
</pallas_src>

<mosaic_0001>
module attributes {stable_mosaic.version = 11 : i64} {
  func.func @_gat_project_kernel(%arg0: i32, %arg1: memref<128x32xbf16, #tpu.memory_space<vmem>>, %arg2: memref<2x32x16xbf16, #tpu.memory_space<vmem>>, %arg3: memref<32x4xbf16, #tpu.memory_space<vmem>>, %arg4: memref<2x128x16xbf16, #tpu.memory_space<vmem>>, %arg5: memref<128x4xf32, #tpu.memory_space<vmem>>) attributes {dimension_semantics = [#tpu.dimension_semantics<parallel>], iteration_bounds = array<i64: 2>, scalar_prefetch = 0 : i64, scratch_operands = 0 : i64, tpu.core_type = #tpu.core_type<tc>, window_params = [{transform_indices = @transform_0, window_bounds = array<i64: 128, 32>}, {pipeline_mode = #tpu.pipeline_mode<synchronous>, transform_indices = @transform_1, window_bounds = array<i64: 2, 32, 16>}, {pipeline_mode = #tpu.pipeline_mode<synchronous>, transform_indices = @transform_2, window_bounds = array<i64: 32, 4>}, {transform_indices = @transform_3, window_bounds = array<i64: 2, 128, 16>}, {transform_indices = @transform_4, window_bounds = array<i64: 128, 4>}]} {
    %c0 = arith.constant 0 : index
    %c0_0 = arith.constant 0 : index
    %0 = vector.load %arg1[%c0, %c0_0] : memref<128x32xbf16, #tpu.memory_space<vmem>>, vector<128x32xbf16>
    %c0_1 = arith.constant 0 : index
    %c0_2 = arith.constant 0 : index
    %c0_3 = arith.constant 0 : index
    %1 = vector.load %arg2[%c0_1, %c0_2, %c0_3] : memref<2x32x16xbf16, #tpu.memory_space<vmem>>, vector<1x32x16xbf16>
    %2 = vector.shape_cast %1 : vector<1x32x16xbf16> to vector<32x16xbf16>
    %cst = arith.constant dense<0.000000e+00> : vector<128x16xf32>
    %3 = tpu.matmul %0, %2, %cst {dimension_numbers = #tpu.dot_dimension_numbers<[1], [0], [0], [1], [0, 0, 1, 1], [], []>} : vector<128x32xbf16>, vector<32x16xbf16>, vector<128x16xf32> -> vector<128x16xf32>
    %4 = arith.truncf %3 : vector<128x16xf32> to vector<128x16xbf16>
    %c0_4 = arith.constant 0 : index
    %c0_5 = arith.constant 0 : index
    %c0_6 = arith.constant 0 : index
    %5 = vector.load %arg4[%c0_4, %c0_5, %c0_6] : memref<2x128x16xbf16, #tpu.memory_space<vmem>>, vector<1x128x16xbf16>
    %6 = vector.shape_cast %5 : vector<1x128x16xbf16> to vector<128x16xbf16>
    %7 = vector.shape_cast %4 : vector<128x16xbf16> to vector<1x128x16xbf16>
    tpu.vector_store %arg4[%c0_4, %c0_5, %c0_6], %7 {strides = array<i32>} : memref<2x128x16xbf16, #tpu.memory_space<vmem>>, vector<1x128x16xbf16>,
    %c1 = arith.constant 1 : index
    %c0_7 = arith.constant 0 : index
    %c0_8 = arith.constant 0 : index
    %8 = vector.load %arg2[%c1, %c0_7, %c0_8] : memref<2x32x16xbf16, #tpu.memory_space<vmem>>, vector<1x32x16xbf16>
    %9 = vector.shape_cast %8 : vector<1x32x16xbf16> to vector<32x16xbf16>
    %cst_9 = arith.constant dense<0.000000e+00> : vector<128x16xf32>
    %10 = tpu.matmul %0, %9, %cst_9 {dimension_numbers = #tpu.dot_dimension_numbers<[1], [0], [0], [1], [0, 0, 1, 1], [], []>} : vector<128x32xbf16>, vector<32x16xbf16>, vector<128x16xf32> -> vector<128x16xf32>
    %11 = arith.truncf %10 : vector<128x16xf32> to vector<128x16xbf16>
    %c1_10 = arith.constant 1 : index
    %c0_11 = arith.constant 0 : index
    %c0_12 = arith.constant 0 : index
    %12 = vector.load %arg4[%c1_10, %c0_11, %c0_12] : memref<2x128x16xbf16, #tpu.memory_space<vmem>>, vector<1x128x16xbf16>
    %13 = vector.shape_cast %12 : vector<1x128x16xbf16> to vector<128x16xbf16>
    %14 = vector.shape_cast %11 : vector<128x16xbf16> to vector<1x128x16xbf16>
    tpu.vector_store %arg4[%c1_10, %c0_11, %c0_12], %14 {strides = array<i32>} : memref<2x128x16xbf16, #tpu.memory_space<vmem>>, vector<1x128x16xbf16>,
    %c0_13 = arith.constant 0 : index
    %c0_14 = arith.constant 0 : index
    %15 = vector.load %arg3[%c0_13, %c0_14] : memref<32x4xbf16, #tpu.memory_space<vmem>>, vector<32x4xbf16>
    %cst_15 = arith.constant dense<0.000000e+00> : vector<128x4xf32>
    %16 = tpu.matmul %0, %15, %cst_15 {dimension_numbers = #tpu.dot_dimension_numbers<[1], [0], [0], [1], [0, 0, 1, 1], [], []>} : vector<128x32xbf16>, vector<32x4xbf16>, vector<128x4xf32> -> vector<128x4xf32>
    %c0_16 = arith.constant 0 : index
    %c0_17 = arith.constant 0 : index
    %17 = vector.load %arg5[%c0_16, %c0_17] : memref<128x4xf32, #tpu.memory_space<vmem>>, vector<128x4xf32>
    tpu.vector_store %arg5[%c0_16, %c0_17], %16 {strides = array<i32>} : memref<128x4xf32, #tpu.memory_space<vmem>>, vector<128x4xf32>,
    return
  }
  func.func @transform_0(%arg0: i32) -> (i32, i32) {
    %c0_i32 = arith.constant 0 : i32
    %c0_i32_0 = arith.constant 0 : i32
    return %arg0, %c0_i32 : i32, i32
  }
  func.func @transform_1(%arg0: i32) -> (i32, i32, i32) {
    %c0_i32 = arith.constant 0 : i32
    %c0_i32_0 = arith.constant 0 : i32
    %c0_i32_1 = arith.constant 0 : i32
    %c0_i32_2 = arith.constant 0 : i32
    return %c0_i32, %c0_i32_0, %c0_i32_1 : i32, i32, i32
  }
  func.func @transform_2(%arg0: i32) -> (i32, i32) {
    %c0_i32 = arith.constant 0 : i32
    %c0_i32_0 = arith.constant 0 : i32
    %c0_i32_1 = arith.constant 0 : i32
    return %c0_i32, %c0_i32_0 : i32, i32
  }
  func.func @transform_3(%arg0: i32) -> (i32, i32, i32) {
    %c0_i32 = arith.constant 0 : i32
    %c0_i32_0 = arith.constant 0 : i32
    %c0_i32_1 = arith.constant 0 : i32
    return %c0_i32, %arg0, %c0_i32_0 : i32, i32, i32
  }
  func.func @transform_4(%arg0: i32) -> (i32, i32) {
    %c0_i32 = arith.constant 0 : i32
    %c0_i32_0 = arith.constant 0 : i32
    return %arg0, %c0_i32 : i32, i32
  }
}

</mosaic_0001>

<llo_original>
// kernel: tpu_custom_call.1
$region0: #{tpu_custom_call.1}
  #allocation0 [shape = 'u32[]', space=smem, size = 0x4, offset = 0x4, fixed_abs, tag = 'smem constant byte address 0x4 - core index']
  #allocation1 [shape = 'u32[144,128]{1,0:T(1,128)}', space=vmem, size = 0x12000, scoped, tag = 'internal scratch']
  %s0 = inlined_call_operand.vmem [shape: bf16[256,32], index: 0, kind: input, shape index: {}]
  %s1 = inlined_call_operand.vmem [shape: bf16[2,32,16], index: 1, kind: input, shape index: {}]
  %s2 = inlined_call_operand.vmem [shape: bf16[32,4], index: 2, kind: input, shape index: {}]
  %s3 = inlined_call_operand.vmem [shape: bf16[2,256,16], index: 3, kind: output, shape index: {0}]
  %s4 = inlined_call_operand.vmem [shape: f32[256,4], index: 4, kind: output, shape index: {1}]
  %5 = xla_tuple %s3, %s4
  %s6 = sld [smem:[#allocation0]]
  $region90: #{tpu_custom_call.1} parent=0
    _
  %s8 = ssub.s32 1, %s6
  %s9 = scalar_select 0, %s8, %s6
  $region1: #{tpu_custom_call.1} parent=0
    #allocation2 [shape = 'u8[131072]{0}', space=vmem, size = 0x20000, scoped, tag = 'output window, operand 0']
    loop: start=0, step=1, limit=4
    $region2: #{tpu_custom_call.1} parent=1 // loop_pre_header
      _
    $region3: #{tpu_custom_call.1} parent=1 // loop_header
      %s11 = sphi 0, %s15
      %p12 = scmp.ge.s32.totalorder %s11, 4
      %s21 = sphi 0, %s23
      %s24 = sphi 0, %s21
      %s25 = sphi 0, %s24
      %s41 = sphi 0, %s25
      %s45 = sphi 0, %s45
      %s47 = sphi 0, %s45
      %s48 = sphi 0, %s47
      %s62 = sphi 0, %s48
      %s66 = sphi 0, %s66
      %s68 = sphi 0, %s66
      %s69 = sphi 0, %s68
      %s83 = sphi 0, %s69
      %s89 = sphi 0, %s91
      %s92 = sphi 0, %s89
      %s93 = sphi 0, %s92
      %s109 = sphi 0, %s93
      %s115 = sphi 0, %s117
      %s118 = sphi 0, %s115
      %s119 = sphi 0, %s118
      %s135 = sphi 0, %s119
    $region4: #{tpu_custom_call.1} parent=1 // loop_header_branch
      %14 = sbr.rel (%p12) target = $region8
    $region5: #{tpu_custom_call.1} parent=1 // loop_body
      %s16 = ssub.s32 %s11, 1
      %s17 = ssub.s32 %s11, 2
      %s18 = sadd.s32 %s11, 1
      %s19 = ssub.s32 %s11, %s18
      %p20 = scmp.eq.s32.totalorder %s19, 0
      %s22 = sadd.s32 %s21, 1
      %s23 = scalar_select %p20, %s21, %s22
      %p26 = pneg %p20
      %p27 = scmp.eq.s32.totalorder %s11, 1
      %p28 = por %p26, %p27
      %p29 = scmp.ne.s32.totalorder %s21, %s24
      %p30 = scmp.eq.s32.totalorder %s11, 0
      %p31 = por %p29, %p30
      %p32 = scmp.ne.s32.totalorder %s21, %s24
      %p33 = scmp.eq.s32.totalorder %s16, 1
      %p34 = por %p32, %p33
      %p35 = scmp.ne.s32.totalorder %s24, %s25
      %p36 = scmp.eq.s32.totalorder %s16, 0
      %p37 = por %p35, %p36
      %p38 = scmp.ne.s32.totalorder %s24, %s25
      %p39 = scmp.eq.s32.totalorder %s17, 1
      %p40 = por %p38, %p39
      %p42 = scmp.ne.s32.totalorder %s25, %s41
      %p43 = scmp.eq.s32.totalorder %s17, 0
      %p44 = por %p42, %p43
      %s46 = sadd.s32 %s45, 1
      %p49 = scmp.eq.s32.totalorder %s11, 1
      %p50 = scmp.ne.s32.totalorder %s45, %s47
      %p51 = scmp.eq.s32.totalorder %s11, 0
      %p52 = por %p50, %p51
      %p53 = scmp.ne.s32.totalorder %s45, %s47
      %p54 = scmp.eq.s32.totalorder %s16, 1
      %p55 = por %p53, %p54
      %p56 = scmp.ne.s32.totalorder %s47, %s48
      %p57 = scmp.eq.s32.totalorder %s16, 0
      %p58 = por %p56, %p57
      %p59 = scmp.ne.s32.totalorder %s47, %s48
      %p60 = scmp.eq.s32.totalorder %s17, 1
      %p61 = por %p59, %p60
      %p63 = scmp.ne.s32.totalorder %s48, %s62
      %p64 = scmp.eq.s32.totalorder %s17, 0
      %p65 = por %p63, %p64
      %s67 = sadd.s32 %s66, 1
      %p70 = scmp.eq.s32.totalorder %s11, 1
      %p71 = scmp.ne.s32.totalorder %s66, %s68
      %p72 = scmp.eq.s32.totalorder %s11, 0
      %p73 = por %p71, %p72
      %p74 = scmp.ne.s32.totalorder %s66, %s68
      %p75 = scmp.eq.s32.totalorder %s16, 1
      %p76 = por %p74, %p75
      %p77 = scmp.ne.s32.totalorder %s68, %s69
      %p78 = scmp.eq.s32.totalorder %s16, 0
      %p79 = por %p77, %p78
      %p80 = scmp.ne.s32.totalorder %s68, %s69
      %p81 = scmp.eq.s32.totalorder %s17, 1
      %p82 = por %p80, %p81
      %p84 = scmp.ne.s32.totalorder %s69, %s83
      %p85 = scmp.eq.s32.totalorder %s17, 0
      %p86 = por %p84, %p85
      %s87 = ssub.s32 %s11, %s18
      %p88 = scmp.eq.s32.totalorder %s87, 0
      %s90 = sadd.s32 %s89, 1
      %s91 = scalar_select %p88, %s89, %s90
      %p94 = pneg %p88
      %p95 = scmp.eq.s32.totalorder %s11, 1
      %p96 = por %p94, %p95
      %p97 = scmp.ne.s32.totalorder %s89, %s92
      %p98 = scmp.eq.s32.totalorder %s11, 0
      %p99 = por %p97, %p98
      %p100 = scmp.ne.s32.totalorder %s89, %s92
      %p101 = scmp.eq.s32.totalorder %s16, 1
      %p102 = por %p100, %p101
      %p103 = scmp.ne.s32.totalorder %s92, %s93
      %p104 = scmp.eq.s32.totalorder %s16, 0
      %p105 = por %p103, %p104
      %p106 = scmp.ne.s32.totalorder %s92, %s93
      %p107 = scmp.eq.s32.totalorder %s17, 1
      %p108 = por %p106, %p107
      %p110 = scmp.ne.s32.totalorder %s93, %s109
      %p111 = scmp.eq.s32.totalorder %s17, 0
      %p112 = por %p110, %p111
      %s113 = ssub.s32 %s11, %s18
      %p114 = scmp.eq.s32.totalorder %s113, 0
      %s116 = sadd.s32 %s115, 1
      %s117 = scalar_select %p114, %s115, %s116
      %p120 = pneg %p114
      %p121 = scmp.eq.s32.totalorder %s11, 1
      %p122 = por %p120, %p121
      %p123 = scmp.ne.s32.totalorder %s115, %s118
      %p124 = scmp.eq.s32.totalorder %s11, 0
      %p125 = por %p123, %p124
      %p126 = scmp.ne.s32.totalorder %s115, %s118
      %p127 = scmp.eq.s32.totalorder %s16, 1
      %p128 = por %p126, %p127
      %p129 = scmp.ne.s32.totalorder %s118, %s119
      %p130 = scmp.eq.s32.totalorder %s16, 0
      %p131 = por %p129, %p130
      %p132 = scmp.ne.s32.totalorder %s118, %s119
      %p133 = scmp.eq.s32.totalorder %s17, 1
      %p134 = por %p132, %p133
      %p136 = scmp.ne.s32.totalorder %s119, %s135
      %p137 = scmp.eq.s32.totalorder %s17, 0
      %p138 = por %p136, %p137
      %p139 = scmp.le.s32.totalorder 1, %s11
      %p140 = scmp.lt.s32.totalorder %s11, 3
      %p141 = pnand %p139, %p140
      %p142 = pneg %p141
      // Predicated region
      $region9: #{tpu_custom_call.1} parent=5 // pred_check
        _
      $region10: #{tpu_custom_call.1} parent=5 // pred_check_branch
        %144 = sbr.rel (%p141) target = $region12
      $region11: #{tpu_custom_call.1} parent=5 // pred_region
        %s145 = ssub.s32 %s11, 1
        // Predicated region
        $region13: #{tpu_custom_call.1} parent=11 // pred_check
          %p146 = pneg %p58
        $region14: #{tpu_custom_call.1} parent=11 // pred_check_branch
          %148 = sbr.rel (%p146) target = $region16
        $region15: #{tpu_custom_call.1} parent=11 // pred_region
          _
        $region16: #{tpu_custom_call.1} parent=11 // pred_fallthru
          _
        // Predicated region
        $region17: #{tpu_custom_call.1} parent=11 // pred_check
          %p149 = pneg %p79
        $region18: #{tpu_custom_call.1} parent=11 // pred_check_branch
          %151 = sbr.rel (%p149) target = $region20
        $region19: #{tpu_custom_call.1} parent=11 // pred_region
          _
        $region20: #{tpu_custom_call.1} parent=11 // pred_fallthru
          _
      $region12: #{tpu_custom_call.1} parent=5 // pred_fallthru
        _
      %p152 = scmp.lt.s32.totalorder %s11, 2
      // Predicated region
      $region21: #{tpu_custom_call.1} parent=5 // pred_check
        %p153 = pneg %p152
      $region22: #{tpu_custom_call.1} parent=5 // pred_check_branch
        %155 = sbr.rel (%p153) target = $region24
      $region23: #{tpu_custom_call.1} parent=5 // pred_region
        // Predicated region
        $region25: #{tpu_custom_call.1} parent=23 // pred_check
          %p156 = pneg %p31
        $region26: #{tpu_custom_call.1} parent=23 // pred_check_branch
          %158 = sbr.rel (%p156) target = $region28
        $region27: #{tpu_custom_call.1} parent=23 // pred_region
          %s159 = smul.u32 16, %s11
          %p160 = scmp.lt.s32.totalorder %s159, 31
          %s161 = scalar_select %p160, %s159, 31
          %s162 = smul.addr %s161, 4
          %s163 = scalar_lea.vmem %s0, %s162
          %s164 = smul.u32 16, %s11
        $region28: #{tpu_custom_call.1} parent=23 // pred_fallthru
          _
      $region24: #{tpu_custom_call.1} parent=5 // pred_fallthru
        _
      %p165 = scmp.le.s32.totalorder 1, %s11
      %p166 = scmp.lt.s32.totalorder %s11, 3
      %p167 = pnand %p165, %p166
      %p168 = pneg %p167
      // Predicated region
      $region29: #{tpu_custom_call.1} parent=5 // pred_check
        _
      $region30: #{tpu_custom_call.1} parent=5 // pred_check_branch
        %170 = sbr.rel (%p167) target = $region32
      $region31: #{tpu_custom_call.1} parent=5 // pred_region
        %s171 = ssub.s32 %s11, 1
        %s172 = smul.u32 16, %s16
        %p173 = scmp.lt.s32.totalorder %s172, 31
        %s174 = scalar_select %p173, %s172, 31
        %s175 = smul.addr %s174, 4
        %s176 = scalar_lea.vmem %s0, %s175
        %p177 = pneg %p37
        %p178 = pneg %p34
        %p179 = pneg %p58
        %p180 = pneg %p55
        %p181 = pneg %p79
        %p182 = pneg %p76
        %p183 = pneg %p105
        %p184 = pneg %p102
        %s185 = sand.u32 %s92, 1
        %s186 = sand.u32 %s92, 1
        %s187 = smul.addr %s186, 128
        %s188 = scalar_lea.vmem [#allocation2], %s187
        %p189 = pneg %p131
        %p190 = pneg %p128
        %s191 = smul.u32 16, %s16
        %p192 = scmp.lt.s32.totalorder %s191, 31
        %s193 = scalar_select %p192, %s191, 31
        %s194 = smul.addr %s193, 8
        %s195 = scalar_lea.vmem %s4, %s194
        %s196 = smul.u32 16, %s16
        %p197 = scmp.lt.s32.totalorder %s196, 31
        %s198 = scalar_select %p197, %s196, 31
        %s199 = smul.addr %s198, 4
        %s200 = scalar_lea.vmem %s0, %s199
        %s201 = smul.u32 16, %s16
        %s202 = smul.u32 16, %s16
        %s203 = smul.u32 16, %s16
        %p204 = scmp.lt.s32.totalorder %s203, 31
        %s205 = scalar_select %p204, %s203, 31
        %s206 = smul.addr %s205, 8
        %s207 = scalar_lea.vmem %s4, %s206
        %s208 = smul.u32 16, %s16
        %v210 = vld [vmem:[%s200] sm:$0xf]
        %v211 = vld [vmem:[%s200 + $0x4] sm:$0xf]
        %v212 = vld [vmem:[%s200 + $0x8] sm:$0xf]
        %v213 = vld [vmem:[%s200 + $0xc] sm:$0xf]
        %v214 = vld [vmem:[%s200 + $0x10] sm:$0xf]
        %v215 = vld [vmem:[%s200 + $0x14] sm:$0xf]
        %v216 = vld [vmem:[%s200 + $0x18] sm:$0xf]
        %v217 = vld [vmem:[%s200 + $0x1c] sm:$0xf]
        %v218 = vld [vmem:[%s200 + $0x20] sm:$0xf]
        %v219 = vld [vmem:[%s200 + $0x24] sm:$0xf]
        %v220 = vld [vmem:[%s200 + $0x28] sm:$0xf]
        %v221 = vld [vmem:[%s200 + $0x2c] sm:$0xf]
        %v222 = vld [vmem:[%s200 + $0x30] sm:$0xf]
        %v223 = vld [vmem:[%s200 + $0x34] sm:$0xf]
        %v224 = vld [vmem:[%s200 + $0x38] sm:$0xf]
        %v225 = vld [vmem:[%s200 + $0x3c] sm:$0xf]
        %v226 = vld [vmem:[%s1] sm:$0xf]
        %v227 = vld [vmem:[%s1 + $0x4] sm:$0xf]
        %v228 = vld [vmem:[%s1 + $0x8] sm:$0xf]
        %v229 = vld [vmem:[%s1 + $0xc] sm:$0xf]
        %v246 = vunpack.c.l.b16 %v210
        %v247 = vunpack.c.l.b16 %v211
        %v248 = vunpack.c.l.b16 %v212
        %v249 = vunpack.c.l.b16 %v213
        %v250 = vunpack.c.l.b16 %v214
        %v251 = vunpack.c.l.b16 %v215
        %v252 = vunpack.c.l.b16 %v216
        %v253 = vunpack.c.l.b16 %v217
        %v254 = vunpack.c.l.b16 %v218
        %v255 = vunpack.c.l.b16 %v219
        %v256 = vunpack.c.l.b16 %v220
        %v257 = vunpack.c.l.b16 %v221
        %v258 = vunpack.c.l.b16 %v222
        %v259 = vunpack.c.l.b16 %v223
        %v260 = vunpack.c.l.b16 %v224
        %v261 = vunpack.c.l.b16 %v225
        %v262 = vpack.c.b16 %v247, %v246
        %v263 = vpack.c.b16 %v249, %v248
        %v264 = vpack.c.b16 %v251, %v250
        %v265 = vpack.c.b16 %v253, %v252
        %v266 = vpack.c.b16 %v255, %v254
        %v267 = vpack.c.b16 %v257, %v256
        %v268 = vpack.c.b16 %v259, %v258
        %v269 = vpack.c.b16 %v261, %v260
        %v274 = vunpack.c.l.b16 %v226
        %v275 = vunpack.c.l.b16 %v227
        %v276 = vunpack.c.l.b16 %v228
        %v277 = vunpack.c.l.b16 %v229
        %v278 = vpack.c.b16 %v275, %v274
        %v279 = vpack.c.b16 %v277, %v276
        %vm282 = vcmask 261120
        %v284 = vsel %vm282, %v262, 0
        %v287 = vsel %vm282, %v263, 0
        %v290 = vsel %vm282, %v264, 0
        %v293 = vsel %vm282, %v265, 0
        %v296 = vsel %vm282, %v266, 0
        %v299 = vsel %vm282, %v267, 0
        %v302 = vsel %vm282, %v268, 0
        %v305 = vsel %vm282, %v269, 0
        %307 = vmatprep.subr.bf16.mxu0 0
        %308 = vmatpush1.bf16.msra.mxu0 %v278
        %309 = vmatprep.subr.bf16.mxu0 0
        %310 = vmatpush1.bf16.msra.mxu0 %v279
        %311 = vmatprep.subr.bf16.mxu0 0
        %312 = vmatpush1.bf16.msra.mxu0 0
        %313 = vmatprep.subr.bf16.mxu0 0
        %314 = vmatpush1.bf16.msra.mxu0 0
        %315 = vmatprep.subr.bf16.mxu0 0
        %316 = vmatpush1.bf16.msra.mxu0 0
        %317 = vmatprep.subr.bf16.mxu0 0
        %318 = vmatpush1.bf16.msra.mxu0 0
        %319 = vmatprep.subr.bf16.mxu0 0
        %320 = vmatpush1.bf16.msra.mxu0 0
        %321 = vmatprep.subr.bf16.mxu0 0
        %322 = vmatpush1.bf16.msra.mxu0 0
        %323 = vmatprep.subr.bf16.mxu0 0
        %324 = vmatpush1.bf16.msra.mxu0 0
        %325 = vmatprep.subr.bf16.mxu0 0
        %326 = vmatpush1.bf16.msra.mxu0 0
        %327 = vmatprep.subr.bf16.mxu0 0
        %328 = vmatpush1.bf16.msra.mxu0 0
        %329 = vmatprep.subr.bf16.mxu0 0
        %330 = vmatpush1.bf16.msra.mxu0 0
        %331 = vmatprep.subr.bf16.mxu0 0
        %332 = vmatpush1.bf16.msra.mxu0 0
        %333 = vmatprep.subr.bf16.mxu0 0
        %334 = vmatpush1.bf16.msra.mxu0 0
        %335 = vmatprep.subr.bf16.mxu0 0
        %336 = vmatpush1.bf16.msra.mxu0 0
        %337 = vmatprep.subr.bf16.mxu0 0
        %338 = vmatpush1.bf16.msra.mxu0 0
        %339 = vmatprep.mubr.bf16.mxu0 0
        %340 = vmatmul.mubr.bf16.gmra.mrb[0].mxu0 %v284
        %v341 = vpop.f32.mrb[0].mxu0
        %v342 = vadd.f32 0.0, %v341
        %v343 = vpop.f32.mrb[0].mxu0
        %v344 = vpop.f32.mrb[0].mxu0
        %v345 = vadd.f32 0.0, %v344
        %v346 = vpop.f32.mrb[0].mxu0
        %347 = vmatprep.mubr.bf16.mxu0 0
        %348 = vmatmul.mubr.bf16.gmra.mrb[0].mxu0 %v287
        %v349 = vpop.f32.mrb[0].mxu0
        %v350 = vadd.f32 0.0, %v349
        %v351 = vpop.f32.mrb[0].mxu0
        %v352 = vpop.f32.mrb[0].mxu0
        %v353 = vadd.f32 0.0, %v352
        %v354 = vpop.f32.mrb[0].mxu0
        %355 = vmatprep.mubr.bf16.mxu0 0
        %356 = vmatmul.mubr.bf16.gmra.mrb[0].mxu0 %v290
        %v357 = vpop.f32.mrb[0].mxu0
        %v358 = vadd.f32 0.0, %v357
        %v359 = vpop.f32.mrb[0].mxu0
        %v360 = vpop.f32.mrb[0].mxu0
        %v361 = vadd.f32 0.0, %v360
        %v362 = vpop.f32.mrb[0].mxu0
        %363 = vmatprep.mubr.bf16.mxu0 0
        %364 = vmatmul.mubr.bf16.gmra.mrb[0].mxu0 %v293
        %v365 = vpop.f32.mrb[0].mxu0
        %v366 = vadd.f32 0.0, %v365
        %v367 = vpop.f32.mrb[0].mxu0
        %v368 = vpop.f32.mrb[0].mxu0
        %v369 = vadd.f32 0.0, %v368
        %v370 = vpop.f32.mrb[0].mxu0
        %371 = vmatprep.mubr.bf16.mxu0 0
        %372 = vmatmul.mubr.bf16.gmra.mrb[0].mxu0 %v296
        %v373 = vpop.f32.mrb[0].mxu0
        %v374 = vadd.f32 0.0, %v373
        %v375 = vpop.f32.mrb[0].mxu0
        %v376 = vpop.f32.mrb[0].mxu0
        %v377 = vadd.f32 0.0, %v376
        %v378 = vpop.f32.mrb[0].mxu0
        %379 = vmatprep.mubr.bf16.mxu0 0
        %380 = vmatmul.mubr.bf16.gmra.mrb[0].mxu0 %v299
        %v381 = vpop.f32.mrb[0].mxu0
        %v382 = vadd.f32 0.0, %v381
        %v383 = vpop.f32.mrb[0].mxu0
        %v384 = vpop.f32.mrb[0].mxu0
        %v385 = vadd.f32 0.0, %v384
        %v386 = vpop.f32.mrb[0].mxu0
        %387 = vmatprep.mubr.bf16.mxu0 0
        %388 = vmatmul.mubr.bf16.gmra.mrb[0].mxu0 %v302
        %v389 = vpop.f32.mrb[0].mxu0
        %v390 = vadd.f32 0.0, %v389
        %v391 = vpop.f32.mrb[0].mxu0
        %v392 = vpop.f32.mrb[0].mxu0
        %v393 = vadd.f32 0.0, %v392
        %v394 = vpop.f32.mrb[0].mxu0
        %395 = vmatprep.mubr.bf16.mxu0 0
        %396 = vmatmul.mubr.bf16.gmra.mrb[0].mxu0 %v305
        %v397 = vpop.f32.mrb[0].mxu0
        %v398 = vadd.f32 0.0, %v397
        %v399 = vpop.f32.mrb[0].mxu0
        %v400 = vpop.f32.mrb[0].mxu0
        %v401 = vadd.f32 0.0, %v400
        %v402 = vpop.f32.mrb[0].mxu0
        %403 = vdwg.mxu0
        %v404 = vpack.c.bf16 %v345, %v342
        %v405 = vpack.c.bf16 %v353, %v350
        %v406 = vpack.c.bf16 %v361, %v358
        %v407 = vpack.c.bf16 %v369, %v366
        %v408 = vpack.c.bf16 %v377, %v374
        %v409 = vpack.c.bf16 %v385, %v382
        %v410 = vpack.c.bf16 %v393, %v390
        %v411 = vpack.c.bf16 %v401, %v398
        %v420 = vunpack.c.l.b16 %v404
        %v421 = vunpack.c.h.b16 %v404
        %v422 = vunpack.c.l.b16 %v405
        %v423 = vunpack.c.h.b16 %v405
        %v424 = vunpack.c.l.b16 %v406
        %v425 = vunpack.c.h.b16 %v406
        %v426 = vunpack.c.l.b16 %v407
        %v427 = vunpack.c.h.b16 %v407
        %v428 = vunpack.c.l.b16 %v408
        %v429 = vunpack.c.h.b16 %v408
        %v430 = vunpack.c.l.b16 %v409
        %v431 = vunpack.c.h.b16 %v409
        %v432 = vunpack.c.l.b16 %v410
        %v433 = vunpack.c.h.b16 %v410
        %v434 = vunpack.c.l.b16 %v411
        %v435 = vunpack.c.h.b16 %v411
        %v436 = vpack.c.b16 %v420, %v420
        %v437 = vpack.c.b16 %v421, %v421
        %v438 = vpack.c.b16 %v422, %v422
        %v439 = vpack.c.b16 %v423, %v423
        %v440 = vpack.c.b16 %v424, %v424
        %v441 = vpack.c.b16 %v425, %v425
        %v442 = vpack.c.b16 %v426, %v426
        %v443 = vpack.c.b16 %v427, %v427
        %v444 = vpack.c.b16 %v428, %v428
        %v445 = vpack.c.b16 %v429, %v429
        %v446 = vpack.c.b16 %v430, %v430
        %v447 = vpack.c.b16 %v431, %v431
        %v448 = vpack.c.b16 %v432, %v432
        %v449 = vpack.c.b16 %v433, %v433
        %v450 = vpack.c.b16 %v434, %v434
        %v451 = vpack.c.b16 %v435, %v435
        %vm468 = vcmask 125952
        %469 = vst.msk [vmem:[%s188] sm:$0xf] %vm468, %v436
        %470 = vst.msk [vmem:[%s188 + $0x4] sm:$0xf] %vm468, %v437
        %471 = vst.msk [vmem:[%s188 + $0x8] sm:$0xf] %vm468, %v438
        %472 = vst.msk [vmem:[%s188 + $0xc] sm:$0xf] %vm468, %v439
        %473 = vst.msk [vmem:[%s188 + $0x10] sm:$0xf] %vm468, %v440
        %474 = vst.msk [vmem:[%s188 + $0x14] sm:$0xf] %vm468, %v441
        %475 = vst.msk [vmem:[%s188 + $0x18] sm:$0xf] %vm468, %v442
        %476 = vst.msk [vmem:[%s188 + $0x1c] sm:$0xf] %vm468, %v443
        %477 = vst.msk [vmem:[%s188 + $0x20] sm:$0xf] %vm468, %v444
        %478 = vst.msk [vmem:[%s188 + $0x24] sm:$0xf] %vm468, %v445
        %479 = vst.msk [vmem:[%s188 + $0x28] sm:$0xf] %vm468, %v446
        %480 = vst.msk [vmem:[%s188 + $0x2c] sm:$0xf] %vm468, %v447
        %481 = vst.msk [vmem:[%s188 + $0x30] sm:$0xf] %vm468, %v448
        %482 = vst.msk [vmem:[%s188 + $0x34] sm:$0xf] %vm468, %v449
        %483 = vst.msk [vmem:[%s188 + $0x38] sm:$0xf] %vm468, %v450
        %484 = vst.msk [vmem:[%s188 + $0x3c] sm:$0xf] %vm468, %v451
        %s485 = scalar_lea.vmem %s1, 16
        %v486 = vld [vmem:[%s485] sm:$0xf]
        %v487 = vld [vmem:[%s485 + $0x4] sm:$0xf]
        %v488 = vld [vmem:[%s485 + $0x8] sm:$0xf]
        %v489 = vld [vmem:[%s485 + $0xc] sm:$0xf]
        %v494 = vunpack.c.l.b16 %v486
        %v495 = vunpack.c.l.b16 %v487
        %v496 = vunpack.c.l.b16 %v488
        %v497 = vunpack.c.l.b16 %v489
        %v498 = vpack.c.b16 %v495, %v494
        %v499 = vpack.c.b16 %v497, %v496
        %502 = vmatprep.subr.bf16.mxu0 0
        %503 = vmatpush1.bf16.msra.mxu0 %v498
        %504 = vmatprep.subr.bf16.mxu0 0
        %505 = vmatpush1.bf16.msra.mxu0 %v499
        %506 = vmatprep.subr.bf16.mxu0 0
        %507 = vmatpush1.bf16.msra.mxu0 0
        %508 = vmatprep.subr.bf16.mxu0 0
        %509 = vmatpush1.bf16.msra.mxu0 0
        %510 = vmatprep.subr.bf16.mxu0 0
        %511 = vmatpush1.bf16.msra.mxu0 0
        %512 = vmatprep.subr.bf16.mxu0 0
        %513 = vmatpush1.bf16.msra.mxu0 0
        %514 = vmatprep.subr.bf16.mxu0 0
        %515 = vmatpush1.bf16.msra.mxu0 0
        %516 = vmatprep.subr.bf16.mxu0 0
        %517 = vmatpush1.bf16.msra.mxu0 0
        %518 = vmatprep.subr.bf16.mxu0 0
        %519 = vmatpush1.bf16.msra.mxu0 0
        %520 = vmatprep.subr.bf16.mxu0 0
        %521 = vmatpush1.bf16.msra.mxu0 0
        %522 = vmatprep.subr.bf16.mxu0 0
        %523 = vmatpush1.bf16.msra.mxu0 0
        %524 = vmatprep.subr.bf16.mxu0 0
        %525 = vmatpush1.bf16.msra.mxu0 0
        %526 = vmatprep.subr.bf16.mxu0 0
        %527 = vmatpush1.bf16.msra.mxu0 0
        %528 = vmatprep.subr.bf16.mxu0 0
        %529 = vmatpush1.bf16.msra.mxu0 0
        %530 = vmatprep.subr.bf16.mxu0 0
        %531 = vmatpush1.bf16.msra.mxu0 0
        %532 = vmatprep.subr.bf16.mxu0 0
        %533 = vmatpush1.bf16.msra.mxu0 0
        %534 = vmatprep.mubr.bf16.mxu0 0
        %535 = vmatmul.mubr.bf16.gmra.mrb[0].mxu0 %v284
        %v536 = vpop.f32.mrb[0].mxu0
        %v537 = vadd.f32 0.0, %v536
        %v538 = vpop.f32.mrb[0].mxu0
        %v539 = vpop.f32.mrb[0].mxu0
        %v540 = vadd.f32 0.0, %v539
        %v541 = vpop.f32.mrb[0].mxu0
        %542 = vmatprep.mubr.bf16.mxu0 0
        %543 = vmatmul.mubr.bf16.gmra.mrb[0].mxu0 %v287
        %v544 = vpop.f32.mrb[0].mxu0
        %v545 = vadd.f32 0.0, %v544
        %v546 = vpop.f32.mrb[0].mxu0
        %v547 = vpop.f32.mrb[0].mxu0
        %v548 = vadd.f32 0.0, %v547
        %v549 = vpop.f32.mrb[0].mxu0
        %550 = vmatprep.mubr.bf16.mxu0 0
        %551 = vmatmul.mubr.bf16.gmra.mrb[0].mxu0 %v290
        %v552 = vpop.f32.mrb[0].mxu0
        %v553 = vadd.f32 0.0, %v552
        %v554 = vpop.f32.mrb[0].mxu0
        %v555 = vpop.f32.mrb[0].mxu0
        %v556 = vadd.f32 0.0, %v555
        %v557 = vpop.f32.mrb[0].mxu0
        %558 = vmatprep.mubr.bf16.mxu0 0
        %559 = vmatmul.mubr.bf16.gmra.mrb[0].mxu0 %v293
        %v560 = vpop.f32.mrb[0].mxu0
        %v561 = vadd.f32 0.0, %v560
        %v562 = vpop.f32.mrb[0].mxu0
        %v563 = vpop.f32.mrb[0].mxu0
        %v564 = vadd.f32 0.0, %v563
        %v565 = vpop.f32.mrb[0].mxu0
        %566 = vmatprep.mubr.bf16.mxu0 0
        %567 = vmatmul.mubr.bf16.gmra.mrb[0].mxu0 %v296
        %v568 = vpop.f32.mrb[0].mxu0
        %v569 = vadd.f32 0.0, %v568
        %v570 = vpop.f32.mrb[0].mxu0
        %v571 = vpop.f32.mrb[0].mxu0
        %v572 = vadd.f32 0.0, %v571
        %v573 = vpop.f32.mrb[0].mxu0
        %574 = vmatprep.mubr.bf16.mxu0 0
        %575 = vmatmul.mubr.bf16.gmra.mrb[0].mxu0 %v299
        %v576 = vpop.f32.mrb[0].mxu0
        %v577 = vadd.f32 0.0, %v576
        %v578 = vpop.f32.mrb[0].mxu0
        %v579 = vpop.f32.mrb[0].mxu0
        %v580 = vadd.f32 0.0, %v579
        %v581 = vpop.f32.mrb[0].mxu0
        %582 = vmatprep.mubr.bf16.mxu0 0
        %583 = vmatmul.mubr.bf16.gmra.mrb[0].mxu0 %v302
        %v584 = vpop.f32.mrb[0].mxu0
        %v585 = vadd.f32 0.0, %v584
        %v586 = vpop.f32.mrb[0].mxu0
        %v587 = vpop.f32.mrb[0].mxu0
        %v588 = vadd.f32 0.0, %v587
        %v589 = vpop.f32.mrb[0].mxu0
        %590 = vmatprep.mubr.bf16.mxu0 0
        %591 = vmatmul.mubr.bf16.gmra.mrb[0].mxu0 %v305
        %v592 = vpop.f32.mrb[0].mxu0
        %v593 = vadd.f32 0.0, %v592
        %v594 = vpop.f32.mrb[0].mxu0
        %v595 = vpop.f32.mrb[0].mxu0
        %v596 = vadd.f32 0.0, %v595
        %v597 = vpop.f32.mrb[0].mxu0
        %598 = vdwg.mxu0
        %v599 = vpack.c.bf16 %v540, %v537
        %v600 = vpack.c.bf16 %v548, %v545
        %v601 = vpack.c.bf16 %v556, %v553
        %v602 = vpack.c.bf16 %v564, %v561
        %v603 = vpack.c.bf16 %v572, %v569
        %v604 = vpack.c.bf16 %v580, %v577
        %v605 = vpack.c.bf16 %v588, %v585
        %v606 = vpack.c.bf16 %v596, %v593
        %v615 = vunpack.c.l.b16 %v599
        %v616 = vunpack.c.h.b16 %v599
        %v617 = vunpack.c.l.b16 %v600
        %v618 = vunpack.c.h.b16 %v600
        %v619 = vunpack.c.l.b16 %v601
        %v620 = vunpack.c.h.b16 %v601
        %v621 = vunpack.c.l.b16 %v602
        %v622 = vunpack.c.h.b16 %v602
        %v623 = vunpack.c.l.b16 %v603
        %v624 = vunpack.c.h.b16 %v603
        %v625 = vunpack.c.l.b16 %v604
        %v626 = vunpack.c.h.b16 %v604
        %v627 = vunpack.c.l.b16 %v605
        %v628 = vunpack.c.h.b16 %v605
        %v629 = vunpack.c.l.b16 %v606
        %v630 = vunpack.c.h.b16 %v606
        %v631 = vpack.c.b16 %v615, %v615
        %v632 = vpack.c.b16 %v616, %v616
        %v633 = vpack.c.b16 %v617, %v617
        %v634 = vpack.c.b16 %v618, %v618
        %v635 = vpack.c.b16 %v619, %v619
        %v636 = vpack.c.b16 %v620, %v620
        %v637 = vpack.c.b16 %v621, %v621
        %v638 = vpack.c.b16 %v622, %v622
        %v639 = vpack.c.b16 %v623, %v623
        %v640 = vpack.c.b16 %v624, %v624
        %v641 = vpack.c.b16 %v625, %v625
        %v642 = vpack.c.b16 %v626, %v626
        %v643 = vpack.c.b16 %v627, %v627
        %v644 = vpack.c.b16 %v628, %v628
        %v645 = vpack.c.b16 %v629, %v629
        %v646 = vpack.c.b16 %v630, %v630
        %s663 = scalar_lea.vmem %s188, 64 [#allocation2]
        %664 = vst.msk [vmem:[%s663] sm:$0xf] %vm468, %v631
        %665 = vst.msk [vmem:[%s663 + $0x4] sm:$0xf] %vm468, %v632
        %666 = vst.msk [vmem:[%s663 + $0x8] sm:$0xf] %vm468, %v633
        %667 = vst.msk [vmem:[%s663 + $0xc] sm:$0xf] %vm468, %v634
        %668 = vst.msk [vmem:[%s663 + $0x10] sm:$0xf] %vm468, %v635
        %669 = vst.msk [vmem:[%s663 + $0x14] sm:$0xf] %vm468, %v636
        %670 = vst.msk [vmem:[%s663 + $0x18] sm:$0xf] %vm468, %v637
        %671 = vst.msk [vmem:[%s663 + $0x1c] sm:$0xf] %vm468, %v638
        %672 = vst.msk [vmem:[%s663 + $0x20] sm:$0xf] %vm468, %v639
        %673 = vst.msk [vmem:[%s663 + $0x24] sm:$0xf] %vm468, %v640
        %674 = vst.msk [vmem:[%s663 + $0x28] sm:$0xf] %vm468, %v641
        %675 = vst.msk [vmem:[%s663 + $0x2c] sm:$0xf] %vm468, %v642
        %676 = vst.msk [vmem:[%s663 + $0x30] sm:$0xf] %vm468, %v643
        %677 = vst.msk [vmem:[%s663 + $0x34] sm:$0xf] %vm468, %v644
        %678 = vst.msk [vmem:[%s663 + $0x38] sm:$0xf] %vm468, %v645
        %679 = vst.msk [vmem:[%s663 + $0x3c] sm:$0xf] %vm468, %v646
        %v680 = vld [vmem:[%s2] sm:$0xf]
        %v681 = vld [vmem:[%s2 + $0x4] sm:$0xf]
        %v682 = vld [vmem:[%s2 + $0x8] sm:$0xf]
        %v683 = vld [vmem:[%s2 + $0xc] sm:$0xf]
        %v688 = vunpack.c.l.b16 %v680
        %v689 = vunpack.c.l.b16 %v681
        %v690 = vunpack.c.l.b16 %v682
        %v691 = vunpack.c.l.b16 %v683
        %v692 = vpack.c.b16 %v689, %v688
        %v693 = vpack.c.b16 %v691, %v690
        %696 = vmatprep.subr.bf16.mxu0 0
        %697 = vmatpush1.bf16.msra.mxu0 %v692
        %698 = vmatprep.subr.bf16.mxu0 0
        %699 = vmatpush1.bf16.msra.mxu0 %v693
        %700 = vmatprep.subr.bf16.mxu0 0
        %701 = vmatpush1.bf16.msra.mxu0 0
        %702 = vmatprep.subr.bf16.mxu0 0
        %703 = vmatpush1.bf16.msra.mxu0 0
        %704 = vmatprep.subr.bf16.mxu0 0
        %705 = vmatpush1.bf16.msra.mxu0 0
        %706 = vmatprep.subr.bf16.mxu0 0
        %707 = vmatpush1.bf16.msra.mxu0 0
        %708 = vmatprep.subr.bf16.mxu0 0
        %709 = vmatpush1.bf16.msra.mxu0 0
        %710 = vmatprep.subr.bf16.mxu0 0
        %711 = vmatpush1.bf16.msra.mxu0 0
        %712 = vmatprep.subr.bf16.mxu0 0
        %713 = vmatpush1.bf16.msra.mxu0 0
        %714 = vmatprep.subr.bf16.mxu0 0
        %715 = vmatpush1.bf16.msra.mxu0 0
        %716 = vmatprep.subr.bf16.mxu0 0
        %717 = vmatpush1.bf16.msra.mxu0 0
        %718 = vmatprep.subr.bf16.mxu0 0
        %719 = vmatpush1.bf16.msra.mxu0 0
        %720 = vmatprep.subr.bf16.mxu0 0
        %721 = vmatpush1.bf16.msra.mxu0 0
        %722 = vmatprep.subr.bf16.mxu0 0
        %723 = vmatpush1.bf16.msra.mxu0 0
        %724 = vmatprep.subr.bf16.mxu0 0
        %725 = vmatpush1.bf16.msra.mxu0 0
        %726 = vmatprep.subr.bf16.mxu0 0
        %727 = vmatpush1.bf16.msra.mxu0 0
        %728 = vmatprep.mubr.bf16.mxu0 0
        %729 = vmatmul.mubr.bf16.gmra.mrb[0].mxu0 %v284
        %v730 = vpop.f32.mrb[0].mxu0
        %v731 = vadd.f32 0.0, %v730
        %v732 = vpop.f32.mrb[0].mxu0
        %v733 = vpop.f32.mrb[0].mxu0
        %v734 = vadd.f32 0.0, %v733
        %v735 = vpop.f32.mrb[0].mxu0
        %736 = vmatprep.mubr.bf16.mxu0 0
        %737 = vmatmul.mubr.bf16.gmra.mrb[0].mxu0 %v287
        %v738 = vpop.f32.mrb[0].mxu0
        %v739 = vadd.f32 0.0, %v738
        %v740 = vpop.f32.mrb[0].mxu0
        %v741 = vpop.f32.mrb[0].mxu0
        %v742 = vadd.f32 0.0, %v741
        %v743 = vpop.f32.mrb[0].mxu0
        %744 = vmatprep.mubr.bf16.mxu0 0
        %745 = vmatmul.mubr.bf16.gmra.mrb[0].mxu0 %v290
        %v746 = vpop.f32.mrb[0].mxu0
        %v747 = vadd.f32 0.0, %v746
        %v748 = vpop.f32.mrb[0].mxu0
        %v749 = vpop.f32.mrb[0].mxu0
        %v750 = vadd.f32 0.0, %v749
        %v751 = vpop.f32.mrb[0].mxu0
        %752 = vmatprep.mubr.bf16.mxu0 0
        %753 = vmatmul.mubr.bf16.gmra.mrb[0].mxu0 %v293
        %v754 = vpop.f32.mrb[0].mxu0
        %v755 = vadd.f32 0.0, %v754
        %v756 = vpop.f32.mrb[0].mxu0
        %v757 = vpop.f32.mrb[0].mxu0
        %v758 = vadd.f32 0.0, %v757
        %v759 = vpop.f32.mrb[0].mxu0
        %760 = vmatprep.mubr.bf16.mxu0 0
        %761 = vmatmul.mubr.bf16.gmra.mrb[0].mxu0 %v296
        %v762 = vpop.f32.mrb[0].mxu0
        %v763 = vadd.f32 0.0, %v762
        %v764 = vpop.f32.mrb[0].mxu0
        %v765 = vpop.f32.mrb[0].mxu0
        %v766 = vadd.f32 0.0, %v765
        %v767 = vpop.f32.mrb[0].mxu0
        %768 = vmatprep.mubr.bf16.mxu0 0
        %769 = vmatmul.mubr.bf16.gmra.mrb[0].mxu0 %v299
        %v770 = vpop.f32.mrb[0].mxu0
        %v771 = vadd.f32 0.0, %v770
        %v772 = vpop.f32.mrb[0].mxu0
        %v773 = vpop.f32.mrb[0].mxu0
        %v774 = vadd.f32 0.0, %v773
        %v775 = vpop.f32.mrb[0].mxu0
        %776 = vmatprep.mubr.bf16.mxu0 0
        %777 = vmatmul.mubr.bf16.gmra.mrb[0].mxu0 %v302
        %v778 = vpop.f32.mrb[0].mxu0
        %v779 = vadd.f32 0.0, %v778
        %v780 = vpop.f32.mrb[0].mxu0
        %v781 = vpop.f32.mrb[0].mxu0
        %v782 = vadd.f32 0.0, %v781
        %v783 = vpop.f32.mrb[0].mxu0
        %784 = vmatprep.mubr.bf16.mxu0 0
        %785 = vmatmul.mubr.bf16.gmra.mrb[0].mxu0 %v305
        %v786 = vpop.f32.mrb[0].mxu0
        %v787 = vadd.f32 0.0, %v786
        %v788 = vpop.f32.mrb[0].mxu0
        %v789 = vpop.f32.mrb[0].mxu0
        %v790 = vadd.f32 0.0, %v789
        %v791 = vpop.f32.mrb[0].mxu0
        %792 = vdwg.mxu0
        %vm793 = vcmask 31744
        %794 = vst.msk [vmem:[%s207] sm:$0xff] %vm793, %v731
        %795 = vst.msk [vmem:[%s207 + $0x8] sm:$0xff] %vm793, %v734
        %796 = vst.msk [vmem:[%s207 + $0x10] sm:$0xff] %vm793, %v739
        %797 = vst.msk [vmem:[%s207 + $0x18] sm:$0xff] %vm793, %v742
        %798 = vst.msk [vmem:[%s207 + $0x20] sm:$0xff] %vm793, %v747
        %799 = vst.msk [vmem:[%s207 + $0x28] sm:$0xff] %vm793, %v750
        %800 = vst.msk [vmem:[%s207 + $0x30] sm:$0xff] %vm793, %v755
        %801 = vst.msk [vmem:[%s207 + $0x38] sm:$0xff] %vm793, %v758
        %802 = vst.msk [vmem:[%s207 + $0x40] sm:$0xff] %vm793, %v763
        %803 = vst.msk [vmem:[%s207 + $0x48] sm:$0xff] %vm793, %v766
        %804 = vst.msk [vmem:[%s207 + $0x50] sm:$0xff] %vm793, %v771
        %805 = vst.msk [vmem:[%s207 + $0x58] sm:$0xff] %vm793, %v774
        %806 = vst.msk [vmem:[%s207 + $0x60] sm:$0xff] %vm793, %v779
        %807 = vst.msk [vmem:[%s207 + $0x68] sm:$0xff] %vm793, %v782
        %808 = vst.msk [vmem:[%s207 + $0x70] sm:$0xff] %vm793, %v787
        %809 = vst.msk [vmem:[%s207 + $0x78] sm:$0xff] %vm793, %v790
        %s810 = sand.u32 %s92, 1
        %s811 = sand.u32 %s92, 1
        %s812 = smul.addr %s811, 128
        %s813 = scalar_lea.vmem [#allocation2], %s812
        %s814 = smul.u32 16, %s16
        %p815 = scmp.lt.s32.totalorder %s814, 31
        %s816 = scalar_select %p815, %s814, 31
        %s817 = smul.addr %s816, 8
        %s818 = scalar_lea.vmem %s4, %s817
        // Predicated region
        $region33: #{tpu_custom_call.1} parent=31 // pred_check
          %p819 = pneg %p102
        $region34: #{tpu_custom_call.1} parent=31 // pred_check_branch
          %821 = sbr.rel (%p819) target = $region36
        $region35: #{tpu_custom_call.1} parent=31 // pred_region
          %s822 = smul.u32 16, %s16
          %s823 = smul.addr %s822, 4
          %s824 = scalar_lea.vmem %s3, %s823
          // Predicated region
          $region37: #{tpu_custom_call.1} parent=35 // pred_check
            _
          $region38: #{tpu_custom_call.1} parent=35 // pred_check_branch
            %826 = sbr.rel (0) target = $region40
          $region39: #{tpu_custom_call.1} parent=35 // pred_region
            // Predicated region
            $region41: #{tpu_custom_call.1} parent=39 // pred_check
              _
            $region42: #{tpu_custom_call.1} parent=39 // pred_check_branch
              %828 = sbr.rel target = $region44
            $region43: #{tpu_custom_call.1} parent=39 // pred_region
              // Predicated region
              $region56: #{tpu_custom_call.1} parent=43 // pred_check
                _
              $region57: #{tpu_custom_call.1} parent=43 // pred_check_branch
                %905 = sbr.rel (0) target = $region59
              $region58: #{tpu_custom_call.1} parent=43 // pred_region
                loop: start=0, step=1, limit=1
                $region60: #{tpu_custom_call.1} parent=58 // loop_pre_header
                  _
                $region61: #{tpu_custom_call.1} parent=58 // loop_header
                  %s907 = sphi 0, %s911
                  %p908 = scmp.ge.s32.totalorder %s907, 1
                  %s912 = sphi %s813, %s813
                  %s913 = sphi %s824, %s824
                $region62: #{tpu_custom_call.1} parent=58 // loop_header_branch
                  %910 = sbr.rel (%p908) target = $region66
                $region63: #{tpu_custom_call.1} parent=58 // loop_body
                  _
                $region64: #{tpu_custom_call.1} parent=58 // loop_footer
                  %s911 = sadd.s32 1, %s907
                $region65: #{tpu_custom_call.1} parent=58 // loop_footer_branch
                  %906 = sbr.rel target = $region61
                $region66: #{tpu_custom_call.1} parent=58 // loop_exit
                  _
                loop: start=0, step=1, limit=1
                $region67: #{tpu_custom_call.1} parent=58 // loop_pre_header
                  _
                $region68: #{tpu_custom_call.1} parent=58 // loop_header
                  %s916 = sphi 0, %s920
                  %p917 = scmp.ge.s32.totalorder %s916, 1
                  %s921 = sphi %s813, %s813
                  %s922 = sphi %s824, %s824
                $region69: #{tpu_custom_call.1} parent=58 // loop_header_branch
                  %919 = sbr.rel (%p917) target = $region73
                $region70: #{tpu_custom_call.1} parent=58 // loop_body
                  %v923 = vld [vmem:[%s921] sm:$0xf]
                  %924 = vst [vmem:[%s922] sm:$0xf] %v923
                  %v925 = vld [vmem:[%s921 + $0x4] sm:$0xf]
                  %926 = vst [vmem:[%s922 + $0x4] sm:$0xf] %v925
                  %v927 = vld [vmem:[%s921 + $0x8] sm:$0xf]
                  %928 = vst [vmem:[%s922 + $0x8] sm:$0xf] %v927
                  %v929 = vld [vmem:[%s921 + $0xc] sm:$0xf]
                  %930 = vst [vmem:[%s922 + $0xc] sm:$0xf] %v929
                  %v931 = vld [vmem:[%s921 + $0x10] sm:$0xf]
                  %932 = vst [vmem:[%s922 + $0x10] sm:$0xf] %v931
                  %v933 = vld [vmem:[%s921 + $0x14] sm:$0xf]
                  %934 = vst [vmem:[%s922 + $0x14] sm:$0xf] %v933
                  %v935 = vld [vmem:[%s921 + $0x18] sm:$0xf]
                  %936 = vst [vmem:[%s922 + $0x18] sm:$0xf] %v935
                  %v937 = vld [vmem:[%s921 + $0x1c] sm:$0xf]
                  %938 = vst [vmem:[%s922 + $0x1c] sm:$0xf] %v937
                  %v939 = vld [vmem:[%s921 + $0x20] sm:$0xf]
                  %940 = vst [vmem:[%s922 + $0x20] sm:$0xf] %v939
                  %v941 = vld [vmem:[%s921 + $0x24] sm:$0xf]
                  %942 = vst [vmem:[%s922 + $0x24] sm:$0xf] %v941
                  %v943 = vld [vmem:[%s921 + $0x28] sm:$0xf]
                  %944 = vst [vmem:[%s922 + $0x28] sm:$0xf] %v943
                  %v945 = vld [vmem:[%s921 + $0x2c] sm:$0xf]
                  %946 = vst [vmem:[%s922 + $0x2c] sm:$0xf] %v945
                  %v947 = vld [vmem:[%s921 + $0x30] sm:$0xf]
                  %948 = vst [vmem:[%s922 + $0x30] sm:$0xf] %v947
                  %v949 = vld [vmem:[%s921 + $0x34] sm:$0xf]
                  %950 = vst [vmem:[%s922 + $0x34] sm:$0xf] %v949
                  %v951 = vld [vmem:[%s921 + $0x38] sm:$0xf]
                  %952 = vst [vmem:[%s922 + $0x38] sm:$0xf] %v951
                  %v953 = vld [vmem:[%s921 + $0x3c] sm:$0xf]
                  %954 = vst [vmem:[%s922 + $0x3c] sm:$0xf] %v953
                  %v955 = vld [vmem:[%s921 + $0x40] sm:$0xf]
                  %956 = vst [vmem:[%s922 + $0x80] sm:$0xf] %v955
                  %v957 = vld [vmem:[%s921 + $0x44] sm:$0xf]
                  %958 = vst [vmem:[%s922 + $0x84] sm:$0xf] %v957
                  %v959 = vld [vmem:[%s921 + $0x48] sm:$0xf]
                  %960 = vst [vmem:[%s922 + $0x88] sm:$0xf] %v959
                  %v961 = vld [vmem:[%s921 + $0x4c] sm:$0xf]
                  %962 = vst [vmem:[%s922 + $0x8c] sm:$0xf] %v961
                  %v963 = vld [vmem:[%s921 + $0x50] sm:$0xf]
                  %964 = vst [vmem:[%s922 + $0x90] sm:$0xf] %v963
                  %v965 = vld [vmem:[%s921 + $0x54] sm:$0xf]
                  %966 = vst [vmem:[%s922 + $0x94] sm:$0xf] %v965
                  %v967 = vld [vmem:[%s921 + $0x58] sm:$0xf]
                  %968 = vst [vmem:[%s922 + $0x98] sm:$0xf] %v967
                  %v969 = vld [vmem:[%s921 + $0x5c] sm:$0xf]
                  %970 = vst [vmem:[%s922 + $0x9c] sm:$0xf] %v969
                  %v971 = vld [vmem:[%s921 + $0x60] sm:$0xf]
                  %972 = vst [vmem:[%s922 + $0xa0] sm:$0xf] %v971
                  %v973 = vld [vmem:[%s921 + $0x64] sm:$0xf]
                  %974 = vst [vmem:[%s922 + $0xa4] sm:$0xf] %v973
                  %v975 = vld [vmem:[%s921 + $0x68] sm:$0xf]
                  %976 = vst [vmem:[%s922 + $0xa8] sm:$0xf] %v975
                  %v977 = vld [vmem:[%s921 + $0x6c] sm:$0xf]
                  %978 = vst [vmem:[%s922 + $0xac] sm:$0xf] %v977
                  %v979 = vld [vmem:[%s921 + $0x70] sm:$0xf]
                  %980 = vst [vmem:[%s922 + $0xb0] sm:$0xf] %v979
                  %v981 = vld [vmem:[%s921 + $0x74] sm:$0xf]
                  %982 = vst [vmem:[%s922 + $0xb4] sm:$0xf] %v981
                  %v983 = vld [vmem:[%s921 + $0x78] sm:$0xf]
                  %984 = vst [vmem:[%s922 + $0xb8] sm:$0xf] %v983
                  %v985 = vld [vmem:[%s921 + $0x7c] sm:$0xf]
                  %986 = vst [vmem:[%s922 + $0xbc] sm:$0xf] %v985
                $region71: #{tpu_custom_call.1} parent=58 // loop_footer
                  %s920 = sadd.s32 1, %s916
                $region72: #{tpu_custom_call.1} parent=58 // loop_footer_branch
                  %915 = sbr.rel target = $region68
                $region73: #{tpu_custom_call.1} parent=58 // loop_exit
                  _
              $region59: #{tpu_custom_call.1} parent=43 // pred_fallthru
                _
            $region44: #{tpu_custom_call.1} parent=39 // pred_fallthru
              _
            // Predicated region
            $region45: #{tpu_custom_call.1} parent=39 // pred_check
              _
            $region46: #{tpu_custom_call.1} parent=39 // pred_check_branch
              %830 = sbr.rel (0) target = $region48
            $region47: #{tpu_custom_call.1} parent=39 // pred_region
              loop: start=0, step=1, limit=1
              $region49: #{tpu_custom_call.1} parent=47 // loop_pre_header
                _
              $region50: #{tpu_custom_call.1} parent=47 // loop_header
                %s833 = sphi 0, %s837
                %p834 = scmp.ge.s32.totalorder %s833, 1
                %s838 = sphi %s813, %s813
                %s839 = sphi %s824, %s824
              $region51: #{tpu_custom_call.1} parent=47 // loop_header_branch
                %836 = sbr.rel (%p834) target = $region55
              $region52: #{tpu_custom_call.1} parent=47 // loop_body
                %v840 = vld [vmem:[%s838] sm:$0xf]
                %841 = vst [vmem:[%s839] sm:$0xf] %v840
                %v842 = vld [vmem:[%s838 + $0x4] sm:$0xf]
                %843 = vst [vmem:[%s839 + $0x4] sm:$0xf] %v842
                %v844 = vld [vmem:[%s838 + $0x8] sm:$0xf]
                %845 = vst [vmem:[%s839 + $0x8] sm:$0xf] %v844
                %v846 = vld [vmem:[%s838 + $0xc] sm:$0xf]
                %847 = vst [vmem:[%s839 + $0xc] sm:$0xf] %v846
                %v848 = vld [vmem:[%s838 + $0x10] sm:$0xf]
                %849 = vst [vmem:[%s839 + $0x10] sm:$0xf] %v848
                %v850 = vld [vmem:[%s838 + $0x14] sm:$0xf]
                %851 = vst [vmem:[%s839 + $0x14] sm:$0xf] %v850
                %v852 = vld [vmem:[%s838 + $0x18] sm:$0xf]
                %853 = vst [vmem:[%s839 + $0x18] sm:$0xf] %v852
                %v854 = vld [vmem:[%s838 + $0x1c] sm:$0xf]
                %855 = vst [vmem:[%s839 + $0x1c] sm:$0xf] %v854
                %v856 = vld [vmem:[%s838 + $0x20] sm:$0xf]
                %857 = vst [vmem:[%s839 + $0x20] sm:$0xf] %v856
                %v858 = vld [vmem:[%s838 + $0x24] sm:$0xf]
                %859 = vst [vmem:[%s839 + $0x24] sm:$0xf] %v858
                %v860 = vld [vmem:[%s838 + $0x28] sm:$0xf]
                %861 = vst [vmem:[%s839 + $0x28] sm:$0xf] %v860
                %v862 = vld [vmem:[%s838 + $0x2c] sm:$0xf]
                %863 = vst [vmem:[%s839 + $0x2c] sm:$0xf] %v862
                %v864 = vld [vmem:[%s838 + $0x30] sm:$0xf]
                %865 = vst [vmem:[%s839 + $0x30] sm:$0xf] %v864
                %v866 = vld [vmem:[%s838 + $0x34] sm:$0xf]
                %867 = vst [vmem:[%s839 + $0x34] sm:$0xf] %v866
                %v868 = vld [vmem:[%s838 + $0x38] sm:$0xf]
                %869 = vst [vmem:[%s839 + $0x38] sm:$0xf] %v868
                %v870 = vld [vmem:[%s838 + $0x3c] sm:$0xf]
                %871 = vst [vmem:[%s839 + $0x3c] sm:$0xf] %v870
                %v872 = vld [vmem:[%s838 + $0x40] sm:$0xf]
                %873 = vst [vmem:[%s839 + $0x80] sm:$0xf] %v872
                %v874 = vld [vmem:[%s838 + $0x44] sm:$0xf]
                %875 = vst [vmem:[%s839 + $0x84] sm:$0xf] %v874
                %v876 = vld [vmem:[%s838 + $0x48] sm:$0xf]
                %877 = vst [vmem:[%s839 + $0x88] sm:$0xf] %v876
                %v878 = vld [vmem:[%s838 + $0x4c] sm:$0xf]
                %879 = vst [vmem:[%s839 + $0x8c] sm:$0xf] %v878
                %v880 = vld [vmem:[%s838 + $0x50] sm:$0xf]
                %881 = vst [vmem:[%s839 + $0x90] sm:$0xf] %v880
                %v882 = vld [vmem:[%s838 + $0x54] sm:$0xf]
                %883 = vst [vmem:[%s839 + $0x94] sm:$0xf] %v882
                %v884 = vld [vmem:[%s838 + $0x58] sm:$0xf]
                %885 = vst [vmem:[%s839 + $0x98] sm:$0xf] %v884
                %v886 = vld [vmem:[%s838 + $0x5c] sm:$0xf]
                %887 = vst [vmem:[%s839 + $0x9c] sm:$0xf] %v886
                %v888 = vld [vmem:[%s838 + $0x60] sm:$0xf]
                %889 = vst [vmem:[%s839 + $0xa0] sm:$0xf] %v888
                %v890 = vld [vmem:[%s838 + $0x64] sm:$0xf]
                %891 = vst [vmem:[%s839 + $0xa4] sm:$0xf] %v890
                %v892 = vld [vmem:[%s838 + $0x68] sm:$0xf]
                %893 = vst [vmem:[%s839 + $0xa8] sm:$0xf] %v892
                %v894 = vld [vmem:[%s838 + $0x6c] sm:$0xf]
                %895 = vst [vmem:[%s839 + $0xac] sm:$0xf] %v894
                %v896 = vld [vmem:[%s838 + $0x70] sm:$0xf]
                %897 = vst [vmem:[%s839 + $0xb0] sm:$0xf] %v896
                %v898 = vld [vmem:[%s838 + $0x74] sm:$0xf]
                %899 = vst [vmem:[%s839 + $0xb4] sm:$0xf] %v898
                %v900 = vld [vmem:[%s838 + $0x78] sm:$0xf]
                %901 = vst [vmem:[%s839 + $0xb8] sm:$0xf] %v900
                %v902 = vld [vmem:[%s838 + $0x7c] sm:$0xf]
                %903 = vst [vmem:[%s839 + $0xbc] sm:$0xf] %v902
              $region53: #{tpu_custom_call.1} parent=47 // loop_footer
                %s837 = sadd.s32 1, %s833
              $region54: #{tpu_custom_call.1} parent=47 // loop_footer_branch
                %832 = sbr.rel target = $region50
              $region55: #{tpu_custom_call.1} parent=47 // loop_exit
                _
            $region48: #{tpu_custom_call.1} parent=39 // pred_fallthru
              _
          $region40: #{tpu_custom_call.1} parent=35 // pred_fallthru
            _
          %987 = vnop
        $region36: #{tpu_custom_call.1} parent=31 // pred_fallthru
          _
        // Predicated region
        $region74: #{tpu_custom_call.1} parent=31 // pred_check
          %p988 = pneg %p128
        $region75: #{tpu_custom_call.1} parent=31 // pred_check_branch
          %990 = sbr.rel (%p988) target = $region77
        $region76: #{tpu_custom_call.1} parent=31 // pred_region
          %s991 = smul.u32 16, %s16
        $region77: #{tpu_custom_call.1} parent=31 // pred_fallthru
          _
      $region32: #{tpu_custom_call.1} parent=5 // pred_fallthru
        _
      %p992 = scmp.le.s32.totalorder 2, %s11
      // Predicated region
      $region78: #{tpu_custom_call.1} parent=5 // pred_check
        %p993 = pneg %p992
      $region79: #{tpu_custom_call.1} parent=5 // pred_check_branch
        %995 = sbr.rel (%p993) target = $region81
      $region80: #{tpu_custom_call.1} parent=5 // pred_region
        %s996 = ssub.s32 %s11, 2
        // Predicated region
        $region82: #{tpu_custom_call.1} parent=80 // pred_check
          %p997 = pneg %p108
        $region83: #{tpu_custom_call.1} parent=80 // pred_check_branch
          %999 = sbr.rel (%p997) target = $region85
        $region84: #{tpu_custom_call.1} parent=80 // pred_region
          %s1000 = sand.u32 %s93, 1
          %s1001 = sand.u32 %s93, 1
          %s1002 = smul.addr %s1001, 128
          %s1003 = scalar_lea.vmem [#allocation2], %s1002
        $region85: #{tpu_custom_call.1} parent=80 // pred_fallthru
          _
        // Predicated region
        $region86: #{tpu_custom_call.1} parent=80 // pred_check
          %p1004 = pneg %p134
        $region87: #{tpu_custom_call.1} parent=80 // pred_check_branch
          %1006 = sbr.rel (%p1004) target = $region89
        $region88: #{tpu_custom_call.1} parent=80 // pred_region
          %s1007 = smul.u32 16, %s17
          %p1008 = scmp.lt.s32.totalorder %s1007, 31
          %s1009 = scalar_select %p1008, %s1007, 31
          %s1010 = smul.addr %s1009, 8
          %s1011 = scalar_lea.vmem %s4, %s1010
        $region89: #{tpu_custom_call.1} parent=80 // pred_fallthru
          _
      $region81: #{tpu_custom_call.1} parent=5 // pred_fallthru
        _
    $region6: #{tpu_custom_call.1} parent=1 // loop_footer
      %s15 = sadd.s32 1, %s11
    $region7: #{tpu_custom_call.1} parent=1 // loop_footer_branch
      %10 = sbr.rel target = $region3
    $region8: #{tpu_custom_call.1} parent=1 // loop_exit
      _

</llo_original>
